<compile_context>
chip_gen: v7x
topology: tpu7x:2x2x1
jax: 0.10.0
libtpu: 0.0.40
codegen_flags: <defaults>
</compile_context>

<pallas_src>
import functools

import jax
import jax.numpy as jnp
from jax.experimental import pallas as pl
from jax.experimental.pallas import tpu as pltpu


def _round_up(v, m):
    return (v + m - 1) // m * m


def _cond_linear_kernel(x_ref, w_ref, b_ref, s_ref, o_ref):
    # x_ref: (TM, K)   row-block of flattened (B*S) inputs
    # w_ref: (K, TN)   column-block of the (pre-transposed) linear weight
    # b_ref: (1, TN)   bias slice
    # s_ref: (TM, TN)  per-row multiplicative scale = gamma * (1 + cov_gamma)
    # o_ref: (TM, TN)
    y = jnp.dot(x_ref[...], w_ref[...], preferred_element_type=jnp.float32)
    o_ref[...] = ((y + b_ref[...]) * s_ref[...]).astype(o_ref.dtype)


@jax.jit
def _cond_linear_pallas(x_flat, w_t, bias, scale_rows):
    """(x_flat @ w_t + bias) * scale_rows, tiled for the MXU.

    x_flat:     (M, K)        possibly bf16
    w_t:        (K, N)        possibly bf16
    bias:       (N,)          f32
    scale_rows: (M, N)        f32 (also defines the output dtype)
    """
    M, K = x_flat.shape
    N = w_t.shape[1]
    out_dtype = scale_rows.dtype

    # --- tile selection -------------------------------------------------
    # Lane-dense output: N padded to a multiple of 128; TN = 128 or 256.
    N_pad = _round_up(N, 128)
    tn = 256 if N_pad % 256 == 0 else 128
    # M tiles up to 512 rows (measured ~85% of HBM roofline); multiple of 8.
    tm = min(512, _round_up(M, 8))
    M_pad = _round_up(M, tm)

    # --- zero-pad operands to tile multiples ------------------------------
    x_p = jnp.pad(x_flat, ((0, M_pad - M), (0, 0)))
    w_p = jnp.pad(w_t, ((0, 0), (0, N_pad - N)))
    b_p = jnp.pad(bias.reshape(1, N), ((0, 0), (0, N_pad - N)))
    s_p = jnp.pad(scale_rows, ((0, M_pad - M), (0, N_pad - N)))

    grid = (N_pad // tn, M_pad // tm)  # M innermost -> weight block reused across M

    # --- scheduler hints ---------------------------------------------------
    out_itemsize = jnp.dtype(out_dtype).itemsize
    flops = 2 * M_pad * K * N_pad
    bytes_accessed = (
        x_p.size * x_p.dtype.itemsize
        + w_p.size * w_p.dtype.itemsize
        + b_p.size * b_p.dtype.itemsize
        + s_p.size * s_p.dtype.itemsize
        + M_pad * N_pad * out_itemsize
    )
    # Double-buffered block footprint + headroom, clamped to v7x's 64 MiB VMEM.
    block_bytes = 2 * (
        tm * K * x_p.dtype.itemsize
        + K * tn * w_p.dtype.itemsize
        + (tm * tn + tn) * s_p.dtype.itemsize
        + tm * tn * out_itemsize
    )
    vmem_limit = int(min(64 * 2**20, max(2 * block_bytes, 16 * 2**20)))

    out_p = pl.pallas_call(
        _cond_linear_kernel,
        out_shape=jax.ShapeDtypeStruct((M_pad, N_pad), out_dtype),
        grid_spec=pltpu.PrefetchScalarGridSpec(
            num_scalar_prefetch=0,
            grid=grid,
            in_specs=[
                pl.BlockSpec((tm, K), lambda n, m: (m, 0)),    # x rows
                pl.BlockSpec((K, tn), lambda n, m: (0, n)),    # W^T cols (constant in m)
                pl.BlockSpec((1, tn), lambda n, m: (0, n)),    # bias
                pl.BlockSpec((tm, tn), lambda n, m: (m, n)),   # per-row scale
            ],
            out_specs=pl.BlockSpec((tm, tn), lambda n, m: (m, n)),
        ),
        compiler_params=pltpu.CompilerParams(
            dimension_semantics=("parallel", "parallel"),
            vmem_limit_bytes=vmem_limit,
        ),
        cost_estimate=pl.CostEstimate(
            flops=flops, transcendentals=0, bytes_accessed=bytes_accessed
        ),
    )(x_p, w_p, b_p, s_p)

    return out_p[:M, :N]


def conditional_linear_forward(params, x, t, cov_embedding=None, compute_dtype=None):
    """Full forward matching the PyTorch module.

    x: (B, S, num_in)   t: (B,) int32   cov_embedding: (B, cov_dim) or None.
    compute_dtype: optionally cast x / W to bf16 for the MXU (v6e/v7x lever);
                   accumulation stays f32 and the output keeps x.dtype.
    """
    num_out, num_in = params["lin_w"].shape
    B, S, _ = x.shape

    # Embedding gather is tiny glue, done in XLA outside the kernel.
    gamma = jnp.take(params["embed_w"], t, axis=0)                    # (B, num_out)

    # Precompute the per-batch multiplicative scale:
    #   (gamma * out) * (1 + cov_gamma)  ==  out * (gamma * (1 + cov_gamma))
    if cov_embedding is not None and "cov_w" in params:
        cov_gamma = cov_embedding @ params["cov_w"].T + params["cov_b"]  # (B, num_out)
        scale = gamma * (1.0 + cov_gamma)
    else:
        scale = gamma  # no covariate conditioning: multiplier is just gamma

    # Flatten (B, S) -> M rows; broadcast per-batch scale to per-row scale.
    x_flat = x.reshape(B * S, num_in)
    scale_rows = jnp.broadcast_to(
        scale[:, None, :].astype(x.dtype), (B, S, num_out)
    ).reshape(B * S, num_out)

    w_t = params["lin_w"].T                                           # (num_in, num_out)
    bias = params["lin_b"].astype(x.dtype)

    if compute_dtype is not None:
        x_flat = x_flat.astype(compute_dtype)
        w_t = w_t.astype(compute_dtype)

    out = _cond_linear_pallas(x_flat, w_t, bias, scale_rows)
    return out.reshape(B, S, num_out)


def _ref_forward(params, x, t, cov_embedding):
    num_out = params["lin_w"].shape[0]
    out = x @ params["lin_w"].T + params["lin_b"]
    gamma = params["embed_w"][t].reshape(t.shape[0], -1, num_out)
    out = gamma * out
    if cov_embedding is not None:
        cov_gamma = cov_embedding @ params["cov_w"].T + params["cov_b"]
        out = out * (1.0 + cov_gamma[:, None, :])
    return out


def init_params(key, num_in, num_out, n_steps, cov_dim):
    k1, k2, k3, k4, k5 = jax.random.split(key, 5)
    lim = 1.0 / jnp.sqrt(num_in)
    clim = 1.0 / jnp.sqrt(cov_dim)
    return {
        # nn.Linear(num_in, num_out): weight (num_out, num_in), bias (num_out,)
        "lin_w": jax.random.uniform(k1, (num_out, num_in), jnp.float32, -lim, lim),
        "lin_b": jax.random.uniform(k2, (num_out,), jnp.float32, -lim, lim),
        # nn.Embedding(n_steps, num_out) with .uniform_() -> U[0, 1)
        "embed_w": jax.random.uniform(k3, (n_steps, num_out), jnp.float32, 0.0, 1.0),
        # nn.Linear(cov_dim, num_out)
        "cov_w": jax.random.uniform(k4, (num_out, cov_dim), jnp.float32, -clim, clim),
        "cov_b": jax.random.uniform(k5, (num_out,), jnp.float32, -clim, clim),
    }


if __name__ == "__main__":
    B, S = 2, 8
    num_in, num_out = 32, 32
    n_steps, cov_dim = 10, 16

    key = jax.random.PRNGKey(0)
    kp, kx, kt, kc = jax.random.split(key, 4)
    params = init_params(kp, num_in, num_out, n_steps, cov_dim)

    x = jax.random.normal(kx, (B, S, num_in), jnp.float32)
    t = jax.random.randint(kt, (B,), 0, n_steps, jnp.int32)
    cov_embedding = jax.random.normal(kc, (B, cov_dim), jnp.float32)

    # f32 path, with covariate conditioning.
    out = jax.block_until_ready(conditional_linear_forward(params, x, t, cov_embedding))
    ref = _ref_forward(params, x, t, cov_embedding)
    assert out.shape == (B, S, num_out)
    assert jnp.allclose(out, ref, rtol=1e-5, atol=1e-5), "mismatch (with cov)"

    # f32 path, no covariate conditioning (no dummy cov tensors / matmul).
    out2 = jax.block_until_ready(conditional_linear_forward(params, x, t, None))
    ref2 = _ref_forward(params, x, t, None)
    assert jnp.allclose(out2, ref2, rtol=1e-5, atol=1e-5), "mismatch (no cov)"

    # bf16 MXU path (v6e/v7x lever); looser tolerance for bf16 input rounding.
    out3 = jax.block_until_ready(
        conditional_linear_forward(params, x, t, cov_embedding,
                                   compute_dtype=jnp.bfloat16))
    assert out3.dtype == x.dtype
    assert jnp.allclose(out3, ref, rtol=5e-2, atol=5e-2), "mismatch (bf16)"

    print("KERNEL_OK")
</pallas_src>

<mosaic_0001>
module attributes {stable_mosaic.version = 11 : i64} {
  func.func @_cond_linear_kernel(%arg0: i32, %arg1: i32, %arg2: memref<16x32xf32, #tpu.memory_space<vmem>>, %arg3: memref<32x128xf32, #tpu.memory_space<vmem>>, %arg4: memref<1x128xf32, #tpu.memory_space<vmem>>, %arg5: memref<16x128xf32, #tpu.memory_space<vmem>>, %arg6: memref<16x128xf32, #tpu.memory_space<vmem>>) attributes {dimension_semantics = [#tpu.dimension_semantics<parallel>, #tpu.dimension_semantics<parallel>], iteration_bounds = array<i64: 1, 1>, scalar_prefetch = 0 : i64, scratch_operands = 0 : i64, tpu.core_type = #tpu.core_type<tc>, window_params = [{transform_indices = @transform_0, window_bounds = array<i64: 16, 32>}, {transform_indices = @transform_1, window_bounds = array<i64: 32, 128>}, {transform_indices = @transform_2, window_bounds = array<i64: 1, 128>}, {transform_indices = @transform_3, window_bounds = array<i64: 16, 128>}, {transform_indices = @transform_4, window_bounds = array<i64: 16, 128>}]} {
    %c0 = arith.constant 0 : index
    %c0_0 = arith.constant 0 : index
    %0 = vector.load %arg2[%c0, %c0_0] : memref<16x32xf32, #tpu.memory_space<vmem>>, vector<16x32xf32>
    %c0_1 = arith.constant 0 : index
    %c0_2 = arith.constant 0 : index
    %1 = vector.load %arg3[%c0_1, %c0_2] : memref<32x128xf32, #tpu.memory_space<vmem>>, vector<32x128xf32>
    %cst = arith.constant dense<0.000000e+00> : vector<16x128xf32>
    %2 = tpu.matmul %0, %1, %cst {dimension_numbers = #tpu.dot_dimension_numbers<[1], [0], [0], [1], [0, 0, 1, 1], [], []>} : vector<16x32xf32>, vector<32x128xf32>, vector<16x128xf32> -> vector<16x128xf32>
    %c0_3 = arith.constant 0 : index
    %c0_4 = arith.constant 0 : index
    %3 = vector.load %arg4[%c0_3, %c0_4] : memref<1x128xf32, #tpu.memory_space<vmem>>, vector<1x128xf32>
    %4 = vector.broadcast %3 : vector<1x128xf32> to vector<16x128xf32>
    %5 = arith.addf %2, %4 : vector<16x128xf32>
    %c0_5 = arith.constant 0 : index
    %c0_6 = arith.constant 0 : index
    %6 = vector.load %arg5[%c0_5, %c0_6] : memref<16x128xf32, #tpu.memory_space<vmem>>, vector<16x128xf32>
    %7 = arith.mulf %5, %6 : vector<16x128xf32>
    %c0_7 = arith.constant 0 : index
    %c0_8 = arith.constant 0 : index
    %8 = vector.load %arg6[%c0_7, %c0_8] : memref<16x128xf32, #tpu.memory_space<vmem>>, vector<16x128xf32>
    tpu.vector_store %arg6[%c0_7, %c0_8], %7 {strides = array<i32>} : memref<16x128xf32, #tpu.memory_space<vmem>>, vector<16x128xf32>,
    return
  }
  func.func @transform_0(%arg0: i32, %arg1: i32) -> (i32, i32) {
    %c0_i32 = arith.constant 0 : i32
    %c0_i32_0 = arith.constant 0 : i32
    return %arg1, %c0_i32 : i32, i32
  }
  func.func @transform_1(%arg0: i32, %arg1: i32) -> (i32, i32) {
    %c0_i32 = arith.constant 0 : i32
    %c0_i32_0 = arith.constant 0 : i32
    return %c0_i32, %arg0 : i32, i32
  }
  func.func @transform_2(%arg0: i32, %arg1: i32) -> (i32, i32) {
    %c0_i32 = arith.constant 0 : i32
    %c0_i32_0 = arith.constant 0 : i32
    return %c0_i32, %arg0 : i32, i32
  }
  func.func @transform_3(%arg0: i32, %arg1: i32) -> (i32, i32) {
    %c0_i32 = arith.constant 0 : i32
    return %arg1, %arg0 : i32, i32
  }
  func.func @transform_4(%arg0: i32, %arg1: i32) -> (i32, i32) {
    %c0_i32 = arith.constant 0 : i32
    return %arg1, %arg0 : i32, i32
  }
}

</mosaic_0001>

<llo_original>
// kernel: _cond_linear_pallas.1
$region0: #{_cond_linear_pallas.1}
  #allocation0 [shape = 'u32[]', space=smem, size = 0x4, offset = 0x4, fixed_abs, tag = 'smem constant byte address 0x4 - core index']
  #allocation1 [shape = 'u32[144,128]{1,0:T(1,128)}', space=vmem, size = 0x12000, scoped, tag = 'internal scratch']
  %s0 = inlined_call_operand.vmem [shape: f32[16,32], index: 0, kind: input, shape index: {}]
  %s1 = inlined_call_operand.vmem [shape: f32[32,128], index: 1, kind: input, shape index: {}]
  %s2 = inlined_call_operand.vmem [shape: f32[1,128], index: 2, kind: input, shape index: {}]
  %s3 = inlined_call_operand.vmem [shape: f32[16,128], index: 3, kind: input, shape index: {}]
  %s4 = inlined_call_operand.hbm [shape: f32[16,128], index: 4, kind: output, shape index: {}]
  %s5 = sld [smem:[#allocation0]]
  $region26: #{_cond_linear_pallas.1} parent=0
    _
  %s7 = ssub.s32 1, %s5
  %s8 = scalar_select 0, %s7, %s5
  $region1: #{_cond_linear_pallas.1} parent=0
    #allocation2 [shape = 'u8[8192]{0}', space=vmem, size = 0x2000, scoped, tag = 'output window, operand 0, single buffered']
    #allocation3 [shape = 's32[1]{0}', space=sflag, size = 0x4, scoped, tag = 'scoped memory for _cond_linear_pallas.1']
    %9 = vsyncpa [#allocation3], 0
    // Predicated region
    $region2: #{_cond_linear_pallas.1} parent=1 // pred_check
      _
    $region3: #{_cond_linear_pallas.1} parent=1 // pred_check_branch
      %11 = sbr.rel (0) target = $region5
    $region4: #{_cond_linear_pallas.1} parent=1 // pred_region
      _
    $region5: #{_cond_linear_pallas.1} parent=1 // pred_fallthru
      _
    // Predicated region
    $region6: #{_cond_linear_pallas.1} parent=1 // pred_check
      _
    $region7: #{_cond_linear_pallas.1} parent=1 // pred_check_branch
      %13 = sbr.rel (0) target = $region9
    $region8: #{_cond_linear_pallas.1} parent=1 // pred_region
      _
    $region9: #{_cond_linear_pallas.1} parent=1 // pred_fallthru
      _
    // Predicated region
    $region10: #{_cond_linear_pallas.1} parent=1 // pred_check
      _
    $region11: #{_cond_linear_pallas.1} parent=1 // pred_check_branch
      %15 = sbr.rel (0) target = $region13
    $region12: #{_cond_linear_pallas.1} parent=1 // pred_region
      _
    $region13: #{_cond_linear_pallas.1} parent=1 // pred_fallthru
      _
    // Predicated region
    $region14: #{_cond_linear_pallas.1} parent=1 // pred_check
      _
    $region15: #{_cond_linear_pallas.1} parent=1 // pred_check_branch
      %17 = sbr.rel (0) target = $region17
    $region16: #{_cond_linear_pallas.1} parent=1 // pred_region
      _
    $region17: #{_cond_linear_pallas.1} parent=1 // pred_fallthru
      _
    %v18 = vld [vmem:[%s0] sm:$0xff]
    %v19 = vld [vmem:[%s0 + $0x8] sm:$0xff]
    %v20 = vld [vmem:[%s1] sm:$0xff]
    %v21 = vld [vmem:[%s1 + $0x8] sm:$0xff]
    %v22 = vld [vmem:[%s1 + $0x10] sm:$0xff]
    %v23 = vld [vmem:[%s1 + $0x18] sm:$0xff]
    %v24 = vld [vmem:[%s2] sm:$0x1]
    %v26 = vlaneseq
    %v27 = vshrl.u32 %v26, 7
    %v28 = vsub.s32 0, %v27
    %v29 = vrot.slane %v24, %v28
    %vm31 = vcmask 261120
    %v33 = vsel %vm31, %v18, 0
    %v36 = vsel %vm31, %v19, 0
    %38 = vmatprep.subr.mxu0 0.0
    %39 = vmatpush1.msra.mxu0 %v20
    %40 = vmatprep.subr.mxu0 0.0
    %41 = vmatpush1.msra.mxu0 %v21
    %42 = vmatprep.subr.mxu0 0.0
    %43 = vmatpush1.msra.mxu0 %v22
    %44 = vmatprep.subr.mxu0 0.0
    %45 = vmatpush1.msra.mxu0 %v23
    %46 = vmatprep.subr.mxu0 0.0
    %47 = vmatpush1.msra.mxu0 0.0
    %48 = vmatprep.subr.mxu0 0.0
    %49 = vmatpush1.msra.mxu0 0.0
    %50 = vmatprep.subr.mxu0 0.0
    %51 = vmatpush1.msra.mxu0 0.0
    %52 = vmatprep.subr.mxu0 0.0
    %53 = vmatpush1.msra.mxu0 0.0
    %54 = vmatprep.subr.mxu0 0.0
    %55 = vmatpush1.msra.mxu0 0.0
    %56 = vmatprep.subr.mxu0 0.0
    %57 = vmatpush1.msra.mxu0 0.0
    %58 = vmatprep.subr.mxu0 0.0
    %59 = vmatpush1.msra.mxu0 0.0
    %60 = vmatprep.subr.mxu0 0.0
    %61 = vmatpush1.msra.mxu0 0.0
    %62 = vmatprep.subr.mxu0 0.0
    %63 = vmatpush1.msra.mxu0 0.0
    %64 = vmatprep.subr.mxu0 0.0
    %65 = vmatpush1.msra.mxu0 0.0
    %66 = vmatprep.subr.mxu0 0.0
    %67 = vmatpush1.msra.mxu0 0.0
    %68 = vmatprep.subr.mxu0 0.0
    %69 = vmatpush1.msra.mxu0 0.0
    %70 = vmatprep.subr.mxu0 0.0
    %71 = vmatpush1.msra.mxu0 0.0
    %72 = vmatprep.subr.mxu0 0.0
    %73 = vmatpush1.msra.mxu0 0.0
    %74 = vmatprep.subr.mxu0 0.0
    %75 = vmatpush1.msra.mxu0 0.0
    %76 = vmatprep.subr.mxu0 0.0
    %77 = vmatpush1.msra.mxu0 0.0
    %78 = vmatprep.subr.mxu0 0.0
    %79 = vmatpush1.msra.mxu0 0.0
    %80 = vmatprep.subr.mxu0 0.0
    %81 = vmatpush1.msra.mxu0 0.0
    %82 = vmatprep.subr.mxu0 0.0
    %83 = vmatpush1.msra.mxu0 0.0
    %84 = vmatprep.subr.mxu0 0.0
    %85 = vmatpush1.msra.mxu0 0.0
    %86 = vmatprep.subr.mxu0 0.0
    %87 = vmatpush1.msra.mxu0 0.0
    %88 = vmatprep.subr.mxu0 0.0
    %89 = vmatpush1.msra.mxu0 0.0
    %90 = vmatprep.subr.mxu0 0.0
    %91 = vmatpush1.msra.mxu0 0.0
    %92 = vmatprep.subr.mxu0 0.0
    %93 = vmatpush1.msra.mxu0 0.0
    %94 = vmatprep.subr.mxu0 0.0
    %95 = vmatpush1.msra.mxu0 0.0
    %96 = vmatprep.subr.mxu0 0.0
    %97 = vmatpush1.msra.mxu0 0.0
    %98 = vmatprep.subr.mxu0 0.0
    %99 = vmatpush1.msra.mxu0 0.0
    %100 = vmatprep.subr.mxu0 0.0
    %101 = vmatpush1.msra.mxu0 0.0
    %102 = vmatprep.mubr.f32.mxu0 0.0
    %103 = vmatmul.mubr.f32.gmra.mrb[0].mxu0 %v33
    %v104 = vpop.f32.mrb[0].mxu0
    %v105 = vadd.f32 %v29, %v104
    %v106 = vpop.f32.mrb[0].mxu0
    %107 = vmatprep.mubr.f32.mxu0 0.0
    %108 = vmatmul.mubr.f32.gmra.mrb[0].mxu0 %v36
    %v109 = vpop.f32.mrb[0].mxu0
    %v110 = vadd.f32 %v29, %v109
    %v111 = vpop.f32.mrb[0].mxu0
    %112 = vdwg.mxu0
    %v113 = vld [vmem:[%s3] sm:$0xff]
    %v114 = vld [vmem:[%s3 + $0x8] sm:$0xff]
    %v115 = vmul.f32 %v105, %v113
    %v116 = vmul.f32 %v110, %v114
    %117 = vst [vmem:[#allocation2] sm:$0xff] %v115
    %118 = vst [vmem:[#allocation2 + $0x8] sm:$0xff] %v116
    // Predicated region
    $region18: #{_cond_linear_pallas.1} parent=1 // pred_check
      _
    $region19: #{_cond_linear_pallas.1} parent=1 // pred_check_branch
      %120 = sbr.rel (0) target = $region21
    $region20: #{_cond_linear_pallas.1} parent=1 // pred_region
      %s122 = ssub.s32 256, 256
      %123 = vsyncadd [#allocation3], %s122
      %s124 = sshll.u32 [#allocation2], 4
      %s125 = int_to_ptr.vmem [resolvable:$true] %s124
      %130 = dma.vmem_to_hbm [thread:$0]  %s125, 256, %s4, [#allocation3], 128, 128, 8
    $region21: #{_cond_linear_pallas.1} parent=1 // pred_fallthru
      _
    // Predicated region
    $region22: #{_cond_linear_pallas.1} parent=1 // pred_check
      _
    $region23: #{_cond_linear_pallas.1} parent=1 // pred_check_branch
      %132 = sbr.rel (0) target = $region25
    $region24: #{_cond_linear_pallas.1} parent=1 // pred_region
      %133 = dma.done [#allocation3], 256
    $region25: #{_cond_linear_pallas.1} parent=1 // pred_fallthru
      _
    %134 = vsyncpa [#allocation3], 1

</llo_original>
